<compile_context>
chip_gen: v7x
topology: tpu7x:2x2x1
jax: 0.10.0
libtpu: 0.0.40
codegen_flags: <defaults>
</compile_context>

<pallas_src>
import functools
import math

import jax
import jax.numpy as jnp
from jax import lax
from jax.experimental import pallas as pl
from jax.experimental.pallas import tpu as pltpu


# ---------------------------------------------------------------------------
# In-kernel helpers
# ---------------------------------------------------------------------------
def _order_key(x):
    """Monotone int32 key: key(a) < key(b)  <=>  a < b  (float32, non-NaN)."""
    bits = pltpu.bitcast(x, jnp.int32)
    # Negative floats: flip magnitude bits so the int32 line orders like the
    # float line.  key(+0.0) == 0.
    return jnp.where(bits < 0, bits ^ jnp.int32(0x7FFFFFFF), bits)


def _kth_largest_key(k, count_ge):
    """int32 order-key of the k-th largest element.

    Bitwise bisection (radix select) over the key's offset-binary
    representation: 32 steps, each one vector compare + one count reduction,
    independent of k.  Returns the largest t with count_ge(t) >= k.
    Implemented as a lax.fori_loop so the 31 slab sweeps are not inlined
    (bounded live ranges, no spill blow-up, fast compiles).
    """
    k = jnp.int32(k)
    # Sign-bit step: is the k-th largest >= +0.0 (key 0)?
    cnt0 = count_ge(jnp.int32(0))
    thr0 = jnp.where(cnt0 >= k, jnp.int32(0), jnp.int32(-(2 ** 31)))

    def body(i, thr):
        bit = lax.shift_left(jnp.int32(1), (30 - i).astype(jnp.int32))
        cand = thr + bit
        return jnp.where(count_ge(cand) >= k, cand, thr)

    return lax.fori_loop(0, 31, body, thr0)


def _sparse_conv_kernel(x_ref, o_ref, *, k_map, k_chan, hw):
    """Fused SparseConv filter for a (N, G, HWp) block of G whole channels.

    Pass 1 keeps the top-`k_map` values of each (n, g) feature map; pass 2
    keeps the top-`k_chan` values of each channel's whole (N, HW) slab after
    pass 1.  Whole channels must be resident for pass 2, so tiling happens
    across channel groups only (the grid).
    """
    x = x_ref[...]                                    # (N, G, HWp) f32
    n, g, hwp = x.shape
    neg = jnp.int32(-(2 ** 31))

    key = _order_key(x)
    if hw != hwp:
        # Padded lanes: force their key below every real value so they are
        # never selected and never counted (pass 2 would otherwise see them
        # as extra zeros and could shift a negative threshold up to 0).
        valid = lax.broadcasted_iota(jnp.int32, (n, g, hwp), 2) < hw
        key = jnp.where(valid, key, neg)
        drop_key = jnp.where(valid, jnp.int32(0), neg)   # pass-2 key of dropped entries
    else:
        drop_key = jnp.int32(0)

    # ---- pass 1: per feature map (per (n, g) row) top-k_map ----
    def count_rows(t):                                # -> (N, G, 1) int32
        return jnp.sum((key >= t).astype(jnp.int32), axis=-1, keepdims=True)

    thr1 = _kth_largest_key(k_map, count_rows)        # (N, G, 1)
    keep1 = key >= thr1

    # ---- pass 2: per channel (over N and HW) top-k_chan of the masked slab ----
    # Dropped real entries participate as exact +0.0 (key 0), like `inp * mask`;
    # padded lanes stay at key INT_MIN and never count.
    key1 = jnp.where(keep1, key, drop_key)

    def count_chans(t):                               # -> (G, 1) int32
        per_row = jnp.sum((key1 >= t).astype(jnp.int32), axis=-1, keepdims=True)
        return jnp.sum(per_row, axis=0)               # (N,G,1) -> (G,1)

    thr2 = _kth_largest_key(k_chan, count_chans)      # (G, 1), broadcasts over (N,G,HWp)

    # Single fused select: pass-1-dropped entries emit 0 either way, and kept
    # entries have key1 == key (no `zeros` / `x1` temporaries).
    o_ref[...] = jnp.where(keep1 & (key1 >= thr2), x, 0.0)


# ---------------------------------------------------------------------------
# Wrapper
# ---------------------------------------------------------------------------
def _pick_group_size(C, N, HWp, budget_bytes):
    """Channels per grid step.

    The channel-group axis is the block's sublane axis, so G must be a
    multiple of 8 (dense vregs) or span all of C (full-extent blocks are
    always legal).  Grow G while it divides C, the grid keeps >= 8 steps
    (v7x 2-TC split + pipeline depth), and ~8x the block fits the budget
    (in/out double buffers + kernel live slabs).
    """
    per_chan = N * HWp * 4
    if C % 8 != 0 or C <= 8:
        return C
    g = 8
    while (C % (2 * g) == 0
           and C // (2 * g) >= 8
           and 8 * (2 * g) * per_chan <= budget_bytes):
        g *= 2
    return g


def sparse_conv_forward(x, k, k_percent):
    """JAX/Pallas equivalent of SparseConv.forward (x is NCHW, like PyTorch)."""
    N, C, H, W = x.shape
    HW = H * W
    HWp = ((HW + 127) // 128) * 128                         # lane-dense padding
    k_per_map = int(math.ceil(k * HW))                      # per feature map
    k_chan = int(math.ceil(k_percent * k_per_map * N))      # per channel, across batch

    orig_dtype = x.dtype
    xr = x.astype(jnp.float32).reshape(N, C, HW)
    if HWp != HW:
        xr = jnp.pad(xr, ((0, 0), (0, 0), (0, HWp - HW)))   # pad value irrelevant (masked)

    # Derive the VMEM budget from the device (v7x: 64 MiB, v5e/v6e: 128 MiB).
    try:
        vmem_cap = int(getattr(pltpu.get_tpu_info(), "vmem_capacity_bytes",
                               64 * 1024 * 1024))
    except Exception:
        vmem_cap = 64 * 1024 * 1024
    budget = (vmem_cap * 3) // 4

    G = _pick_group_size(C, N, HWp, budget)
    block_bytes = N * G * HWp * 4

    kernel = functools.partial(_sparse_conv_kernel,
                               k_map=k_per_map, k_chan=k_chan, hw=HW)

    spec = pl.BlockSpec((N, G, HWp), lambda g: (0, g, 0))
    cost = pl.CostEstimate(
        # ~3 vector ops per element per bisection step, 2 passes x 32 steps.
        flops=int(3 * 64 * N * C * HWp),
        transcendentals=0,
        bytes_accessed=int(2 * N * C * HWp * 4),
    )

    out = pl.pallas_call(
        kernel,
        out_shape=jax.ShapeDtypeStruct((N, C, HWp), jnp.float32),
        grid=(C // G,),
        in_specs=[spec],
        out_specs=spec,
        # Each output block depends only on its own resident input block:
        # write in place, no second full-size HBM buffer.
        input_output_aliases={0: 0},
        compiler_params=pltpu.CompilerParams(
            # Channel groups are independent -> v7x can split the grid across
            # both TensorCores; harmless on v5e/v6e.
            dimension_semantics=("parallel",),
            # Explicit limit (v5e default is only 16 MiB), capped by the
            # device budget and sized to the actual block.
            vmem_limit_bytes=int(min(budget, max(32 * 1024 * 1024, 8 * block_bytes))),
        ),
        cost_estimate=cost,
    )(xr)

    out = out[:, :, :HW].reshape(N, C, H, W)
    return out.astype(orig_dtype)


# ---------------------------------------------------------------------------
# Pure-JAX reference (mirrors the PyTorch module's layout plumbing exactly).
# ---------------------------------------------------------------------------
def _topk_rows_ref(x, k):
    vals, _ = lax.top_k(x, k)
    thr = vals[:, -1:]
    return jnp.where(x >= thr, x, jnp.zeros_like(x))


def _sparse_conv_ref(x, k, k_percent):
    N, C, H, W = x.shape
    k_per_map = math.ceil(k * H * W)
    xt = jnp.transpose(x, (1, 0, 2, 3))
    inp = xt.reshape(C * N, H * W)
    inp = _topk_rows_ref(inp, k_per_map)
    inp = inp.reshape(C, N * H * W)
    k_factor = math.ceil(k_percent * k_per_map * N)
    inp = _topk_rows_ref(inp, k_factor)
    inp = inp.reshape(C, N, H, W)
    return jnp.transpose(inp, (1, 0, 2, 3))


if __name__ == "__main__":
    # SparseConv has no learnable parameters; only hyperparameters k, k_percent.
    k, k_percent = 0.1, 0.5

    # Primary check: small NCHW input, 128-aligned spatial size.
    x = jax.random.normal(jax.random.PRNGKey(0), (2, 4, 16, 16), dtype=jnp.float32)
    fwd = jax.jit(functools.partial(sparse_conv_forward, k=k, k_percent=k_percent))
    out = jax.block_until_ready(fwd(x))
    ref = _sparse_conv_ref(x, k, k_percent)
    assert out.shape == x.shape and out.dtype == x.dtype
    assert jnp.allclose(out, ref, atol=1e-6), "mismatch vs pure-JAX reference (aligned)"

    # Secondary check: non-128-aligned spatial size (the lane-padding path that
    # real ResNet shapes 7x7 / 14x14 / 28x28 / 56x56 take).
    x2 = jax.random.normal(jax.random.PRNGKey(1), (2, 4, 9, 9), dtype=jnp.float32)
    fwd2 = jax.jit(functools.partial(sparse_conv_forward, k=k, k_percent=k_percent))
    out2 = jax.block_until_ready(fwd2(x2))
    ref2 = _sparse_conv_ref(x2, k, k_percent)
    assert out2.shape == x2.shape and out2.dtype == x2.dtype
    assert jnp.allclose(out2, ref2, atol=1e-6), "mismatch vs pure-JAX reference (padded)"

    print("KERNEL_OK")
</pallas_src>

<mosaic_0001>
module attributes {stable_mosaic.version = 11 : i64} {
  func.func @_sparse_conv_kernel(%arg0: i32, %arg1: memref<2x4x256xf32, #tpu.memory_space<vmem>>, %arg2: memref<2x4x256xf32, #tpu.memory_space<vmem>>) attributes {dimension_semantics = [#tpu.dimension_semantics<parallel>], iteration_bounds = array<i64: 1>, scalar_prefetch = 0 : i64, scratch_operands = 0 : i64, tpu.core_type = #tpu.core_type<tc>, window_params = [{transform_indices = @transform_0, window_bounds = array<i64: 2, 4, 256>}, {transform_indices = @transform_1, window_bounds = array<i64: 2, 4, 256>}]} {
    %c0 = arith.constant 0 : index
    %c0_0 = arith.constant 0 : index
    %c0_1 = arith.constant 0 : index
    %0 = vector.load %arg1[%c0, %c0_0, %c0_1] : memref<2x4x256xf32, #tpu.memory_space<vmem>>, vector<2x4x256xf32>
    %1 = tpu.bitcast %0 : vector<2x4x256xf32> -> vector<2x4x256xi32>
    %c0_i32 = arith.constant 0 : i32
    %2 = vector.broadcast %c0_i32 : i32 to vector<2x4x256xi32>
    %3 = arith.cmpi slt, %1, %2 : vector<2x4x256xi32>
    %c2147483647_i32 = arith.constant 2147483647 : i32
    %4 = vector.broadcast %c2147483647_i32 : i32 to vector<2x4x256xi32>
    %5 = arith.xori %1, %4 : vector<2x4x256xi32>
    %6 = arith.select %3, %5, %1 : vector<2x4x256xi1>, vector<2x4x256xi32>
    %c0_i32_2 = arith.constant 0 : i32
    %7 = vector.broadcast %c0_i32_2 : i32 to vector<2x4x256xi32>
    %8 = arith.cmpi sge, %6, %7 : vector<2x4x256xi32>
    %9 = arith.extui %8 : vector<2x4x256xi1> to vector<2x4x256xi32>
    %cst = arith.constant dense<0> : vector<2x4xi32>
    %10 = vector.multi_reduction <add>, %9, %cst [2] : vector<2x4x256xi32> to vector<2x4xi32>
    %11 = vector.shape_cast %10 : vector<2x4xi32> to vector<2x4x1xi32>
    %c26_i32 = arith.constant 26 : i32
    %12 = vector.broadcast %c26_i32 : i32 to vector<2x4x1xi32>
    %13 = arith.cmpi sge, %11, %12 : vector<2x4x1xi32>
    %c0_i32_3 = arith.constant 0 : i32
    %c-2147483648_i32 = arith.constant -2147483648 : i32
    %14 = vector.broadcast %c0_i32_3 : i32 to vector<2x4x1xi32>
    %15 = vector.broadcast %c-2147483648_i32 : i32 to vector<2x4x1xi32>
    %16 = arith.select %13, %14, %15 : vector<2x4x1xi1>, vector<2x4x1xi32>
    %c26_i32_4 = arith.constant 26 : i32
    %c0_i32_5 = arith.constant 0 : i32
    %c31_i32 = arith.constant 31 : i32
    %17 = arith.addi %c0_i32_5, %c31_i32 : i32
    %c1_i32 = arith.constant 1 : i32
    %18 = scf.for %arg3 = %c0_i32_5 to %17 step %c1_i32 iter_args(%arg4 = %16) -> (vector<2x4x1xi32>)  : i32 {
      %c30_i32 = arith.constant 30 : i32
      %43 = arith.subi %c30_i32, %arg3 : i32
      %c1_i32_23 = arith.constant 1 : i32
      %44 = arith.shli %c1_i32_23, %43 : i32
      %45 = vector.broadcast %44 : i32 to vector<2x4x1xi32>
      %46 = arith.addi %arg4, %45 : vector<2x4x1xi32>
      %47 = vector.broadcast %46 : vector<2x4x1xi32> to vector<2x4x256xi32>
      %48 = arith.cmpi sge, %6, %47 : vector<2x4x256xi32>
      %49 = arith.extui %48 : vector<2x4x256xi1> to vector<2x4x256xi32>
      %cst_24 = arith.constant dense<0> : vector<2x4xi32>
      %50 = vector.multi_reduction <add>, %49, %cst_24 [2] : vector<2x4x256xi32> to vector<2x4xi32>
      %51 = vector.shape_cast %50 : vector<2x4xi32> to vector<2x4x1xi32>
      %52 = vector.broadcast %c26_i32_4 : i32 to vector<2x4x1xi32>
      %53 = arith.cmpi sge, %51, %52 : vector<2x4x1xi32>
      %54 = arith.select %53, %46, %arg4 : vector<2x4x1xi1>, vector<2x4x1xi32>
      scf.yield %54 : vector<2x4x1xi32>
    }
    %c31_i32_6 = arith.constant 31 : i32
    %19 = vector.broadcast %18 : vector<2x4x1xi32> to vector<2x4x256xi32>
    %20 = arith.cmpi sge, %6, %19 : vector<2x4x256xi32>
    %c0_i32_7 = arith.constant 0 : i32
    %21 = vector.broadcast %c0_i32_7 : i32 to vector<2x4x256xi32>
    %22 = arith.select %20, %6, %21 : vector<2x4x256xi1>, vector<2x4x256xi32>
    %c0_i32_8 = arith.constant 0 : i32
    %23 = vector.broadcast %c0_i32_8 : i32 to vector<2x4x256xi32>
    %24 = arith.cmpi sge, %22, %23 : vector<2x4x256xi32>
    %25 = arith.extui %24 : vector<2x4x256xi1> to vector<2x4x256xi32>
    %cst_9 = arith.constant dense<0> : vector<2x4xi32>
    %26 = vector.multi_reduction <add>, %25, %cst_9 [2] : vector<2x4x256xi32> to vector<2x4xi32>
    %27 = vector.shape_cast %26 : vector<2x4xi32> to vector<2x4x1xi32>
    %cst_10 = arith.constant dense<0> : vector<4x1xi32>
    %28 = vector.multi_reduction <add>, %27, %cst_10 [0] : vector<2x4x1xi32> to vector<4x1xi32>
    %c26_i32_11 = arith.constant 26 : i32
    %29 = vector.broadcast %c26_i32_11 : i32 to vector<4x1xi32>
    %30 = arith.cmpi sge, %28, %29 : vector<4x1xi32>
    %c0_i32_12 = arith.constant 0 : i32
    %c-2147483648_i32_13 = arith.constant -2147483648 : i32
    %31 = vector.broadcast %c0_i32_12 : i32 to vector<4x1xi32>
    %32 = vector.broadcast %c-2147483648_i32_13 : i32 to vector<4x1xi32>
    %33 = arith.select %30, %31, %32 : vector<4x1xi1>, vector<4x1xi32>
    %c26_i32_14 = arith.constant 26 : i32
    %c0_i32_15 = arith.constant 0 : i32
    %c31_i32_16 = arith.constant 31 : i32
    %34 = arith.addi %c0_i32_15, %c31_i32_16 : i32
    %c1_i32_17 = arith.constant 1 : i32
    %35 = scf.for %arg3 = %c0_i32_15 to %34 step %c1_i32_17 iter_args(%arg4 = %33) -> (vector<4x1xi32>)  : i32 {
      %c30_i32 = arith.constant 30 : i32
      %43 = arith.subi %c30_i32, %arg3 : i32
      %c1_i32_23 = arith.constant 1 : i32
      %44 = arith.shli %c1_i32_23, %43 : i32
      %45 = vector.broadcast %44 : i32 to vector<4x1xi32>
      %46 = arith.addi %arg4, %45 : vector<4x1xi32>
      %47 = vector.shape_cast %46 : vector<4x1xi32> to vector<1x4x1xi32>
      %48 = vector.broadcast %47 : vector<1x4x1xi32> to vector<2x4x256xi32>
      %49 = arith.cmpi sge, %22, %48 : vector<2x4x256xi32>
      %50 = arith.extui %49 : vector<2x4x256xi1> to vector<2x4x256xi32>
      %cst_24 = arith.constant dense<0> : vector<2x4xi32>
      %51 = vector.multi_reduction <add>, %50, %cst_24 [2] : vector<2x4x256xi32> to vector<2x4xi32>
      %52 = vector.shape_cast %51 : vector<2x4xi32> to vector<2x4x1xi32>
      %cst_25 = arith.constant dense<0> : vector<4x1xi32>
      %53 = vector.multi_reduction <add>, %52, %cst_25 [0] : vector<2x4x1xi32> to vector<4x1xi32>
      %54 = vector.broadcast %c26_i32_14 : i32 to vector<4x1xi32>
      %55 = arith.cmpi sge, %53, %54 : vector<4x1xi32>
      %56 = arith.select %55, %46, %arg4 : vector<4x1xi1>, vector<4x1xi32>
      scf.yield %56 : vector<4x1xi32>
    }
    %c31_i32_18 = arith.constant 31 : i32
    %36 = vector.shape_cast %35 : vector<4x1xi32> to vector<1x4x1xi32>
    %37 = vector.broadcast %36 : vector<1x4x1xi32> to vector<2x4x256xi32>
    %38 = arith.cmpi sge, %22, %37 : vector<2x4x256xi32>
    %39 = arith.andi %20, %38 : vector<2x4x256xi1>
    %cst_19 = arith.constant 0.000000e+00 : f32
    %40 = vector.broadcast %cst_19 : f32 to vector<2x4x256xf32>
    %41 = arith.select %39, %0, %40 : vector<2x4x256xi1>, vector<2x4x256xf32>
    %c0_20 = arith.constant 0 : index
    %c0_21 = arith.constant 0 : index
    %c0_22 = arith.constant 0 : index
    %42 = vector.load %arg2[%c0_20, %c0_21, %c0_22] : memref<2x4x256xf32, #tpu.memory_space<vmem>>, vector<2x4x256xf32>
    tpu.vector_store %arg2[%c0_20, %c0_21, %c0_22], %41 {strides = array<i32>} : memref<2x4x256xf32, #tpu.memory_space<vmem>>, vector<2x4x256xf32>,
    return
  }
  func.func @transform_0(%arg0: i32) -> (i32, i32, i32) {
    %c0_i32 = arith.constant 0 : i32
    %c0_i32_0 = arith.constant 0 : i32
    %c0_i32_1 = arith.constant 0 : i32
    return %c0_i32, %arg0, %c0_i32_0 : i32, i32, i32
  }
  func.func @transform_1(%arg0: i32) -> (i32, i32, i32) {
    %c0_i32 = arith.constant 0 : i32
    %c0_i32_0 = arith.constant 0 : i32
    %c0_i32_1 = arith.constant 0 : i32
    return %c0_i32, %arg0, %c0_i32_0 : i32, i32, i32
  }
}

</mosaic_0001>

<llo_original>
// kernel: sparse_conv_forward.1
$region0: #{sparse_conv_forward.1}
  #allocation0 [shape = 'u32[]', space=smem, size = 0x4, offset = 0x4, fixed_abs, tag = 'smem constant byte address 0x4 - core index']
  #allocation1 [shape = 'u32[144,128]{1,0:T(1,128)}', space=vmem, size = 0x12000, scoped, tag = 'internal scratch']
  %s0 = inlined_call_operand.vmem [shape: f32[2,4,256], index: 0, kind: input, shape index: {}, may-alias: {0,1}]
  %s1 = inlined_call_operand.vmem [shape: f32[2,4,256], index: 1, kind: output, shape index: {}, may-alias: {0,1}]
  %s2 = sld [smem:[#allocation0]]
  $region28: #{sparse_conv_forward.1} parent=0
    _
  %s4 = ssub.s32 1, %s2
  %s5 = scalar_select 0, %s4, %s2
  // Predicated region
  $region2: #{sparse_conv_forward.1} parent=0 // pred_check
    _
  $region3: #{sparse_conv_forward.1} parent=0 // pred_check_branch
    %7 = sbr.rel (0) target = $region5
  $region4: #{sparse_conv_forward.1} parent=0 // pred_region
    _
  $region5: #{sparse_conv_forward.1} parent=0 // pred_fallthru
    _
  %v8 = vld [vmem:[%s0] sm:$0xff]
  %v9 = vld [vmem:[%s0 + $0x8] sm:$0xff]
  %v12 = vcombine.high %v8, %v8
  %v13 = vcombine.high %v9, %v9
  %vm14 = vcmp.lt.s32.totalorder %v8, 0
  %vm15 = vcmp.lt.s32.totalorder %v12, 0
  %vm16 = vcmp.lt.s32.totalorder %v9, 0
  %vm17 = vcmp.lt.s32.totalorder %v13, 0
  %v18 = vxor.u32 %v8, 2147483647
  %v19 = vxor.u32 %v12, 2147483647
  %v20 = vxor.u32 %v9, 2147483647
  %v21 = vxor.u32 %v13, 2147483647
  %v22 = vsel %vm14, %v18, %v8
  %v23 = vsel %vm15, %v19, %v12
  %v24 = vsel %vm16, %v20, %v9
  %v25 = vsel %vm17, %v21, %v13
  %vm26 = vcmp.ge.s32.totalorder %v22, 0
  %vm27 = vcmp.ge.s32.totalorder %v23, 0
  %vm28 = vcmp.ge.s32.totalorder %v24, 0
  %vm29 = vcmp.ge.s32.totalorder %v25, 0
  %v30 = vsel %vm26, 1, 0
  %v31 = vsel %vm27, 1, 0
  %v32 = vsel %vm28, 1, 0
  %v33 = vsel %vm29, 1, 0
  %vm34 = vcmask 1043456
  %v35 = vsel %vm34, %v30, 0
  %v36 = vsel %vm34, %v31, 0
  %v37 = vadd.s32 %v35, %v36
  %v38 = vand.u32 %v37, 65535
  %v39 = vshrl.u32 %v37, 16
  %v40 = vcvt.s32.f32 %v38
  %v41 = vcvt.s32.f32 %v39
  %42 = vadd.xlane.f32.xlu0 %v40
  %v43 = vpop.xlane.xlu0 %42
  %44 = vadd.xlane.f32.xlu0 %v41
  %v45 = vpop.xlane.xlu0 %44
  %v46 = vcvt.f32.s32 %v43
  %v47 = vcvt.f32.s32 %v45
  %v48 = vshll.u32 %v47, 16
  %v49 = vadd.s32 %v48, %v46
  %v50 = vsel %vm34, %v32, 0
  %v51 = vsel %vm34, %v33, 0
  %v52 = vadd.s32 %v50, %v51
  %v53 = vand.u32 %v52, 65535
  %v54 = vshrl.u32 %v52, 16
  %v55 = vcvt.s32.f32 %v53
  %v56 = vcvt.s32.f32 %v54
  %57 = vadd.xlane.f32.xlu0 %v55
  %v58 = vpop.xlane.xlu0 %57
  %59 = vadd.xlane.f32.xlu0 %v56
  %v60 = vpop.xlane.xlu0 %59
  %v61 = vcvt.f32.s32 %v58
  %v62 = vcvt.f32.s32 %v60
  %v63 = vshll.u32 %v62, 16
  %v64 = vadd.s32 %v63, %v61
  %vm65 = vcmp.ge.s32.totalorder %v49, 26
  %vm66 = vcmp.ge.s32.totalorder %v64, 26
  %v67 = vsel %vm65, 0, 2147483648
  %v68 = vsel %vm66, 0, 2147483648
  loop: start=0, step=1, limit=31
  $region6: #{sparse_conv_forward.1} parent=0 // loop_pre_header
    _
  $region7: #{sparse_conv_forward.1} parent=0 // loop_header
    %s70 = sphi 0, %s74
    %p71 = scmp.ge.s32.totalorder %s70, 31
    %v75 = vphi %v67, %v122
    %v76 = vphi %v68, %v123
  $region8: #{sparse_conv_forward.1} parent=0 // loop_header_branch
    %73 = sbr.rel (%p71) target = $region12
  $region9: #{sparse_conv_forward.1} parent=0 // loop_body
    %s77 = ssub.s32 30, %s70
    %s78 = sshll.u32 1, %s77
    %v79 = vstv %s78
    %v80 = vadd.s32 %v75, %v79
    %v81 = vadd.s32 %v76, %v79
    %vm82 = vcmp.ge.s32.totalorder %v22, %v80
    %vm83 = vcmp.ge.s32.totalorder %v23, %v80
    %vm84 = vcmp.ge.s32.totalorder %v24, %v81
    %vm85 = vcmp.ge.s32.totalorder %v25, %v81
    %v86 = vsel %vm82, 1, 0
    %v87 = vsel %vm83, 1, 0
    %v88 = vsel %vm84, 1, 0
    %v89 = vsel %vm85, 1, 0
    %v90 = vsel %vm34, %v86, 0
    %v91 = vsel %vm34, %v87, 0
    %v92 = vadd.s32 %v90, %v91
    %v93 = vand.u32 %v92, 65535
    %v94 = vshrl.u32 %v92, 16
    %v95 = vcvt.s32.f32 %v93
    %v96 = vcvt.s32.f32 %v94
    %97 = vadd.xlane.f32.xlu0 %v95
    %v98 = vpop.xlane.xlu0 %97
    %99 = vadd.xlane.f32.xlu0 %v96
    %v100 = vpop.xlane.xlu0 %99
    %v101 = vcvt.f32.s32 %v98
    %v102 = vcvt.f32.s32 %v100
    %v103 = vshll.u32 %v102, 16
    %v104 = vadd.s32 %v103, %v101
    %v105 = vsel %vm34, %v88, 0
    %v106 = vsel %vm34, %v89, 0
    %v107 = vadd.s32 %v105, %v106
    %v108 = vand.u32 %v107, 65535
    %v109 = vshrl.u32 %v107, 16
    %v110 = vcvt.s32.f32 %v108
    %v111 = vcvt.s32.f32 %v109
    %112 = vadd.xlane.f32.xlu0 %v110
    %v113 = vpop.xlane.xlu0 %112
    %114 = vadd.xlane.f32.xlu0 %v111
    %v115 = vpop.xlane.xlu0 %114
    %v116 = vcvt.f32.s32 %v113
    %v117 = vcvt.f32.s32 %v115
    %v118 = vshll.u32 %v117, 16
    %v119 = vadd.s32 %v118, %v116
    %vm120 = vcmp.ge.s32.totalorder %v104, 26
    %vm121 = vcmp.ge.s32.totalorder %v119, 26
    %v122 = vsel %vm120, %v80, %v75
    %v123 = vsel %vm121, %v81, %v76
  $region10: #{sparse_conv_forward.1} parent=0 // loop_footer
    %s74 = sadd.s32 1, %s70
  $region11: #{sparse_conv_forward.1} parent=0 // loop_footer_branch
    %69 = sbr.rel target = $region7
  $region12: #{sparse_conv_forward.1} parent=0 // loop_exit
    _
  %vm124 = vcmp.ge.s32.totalorder %v22, %v75
  %vm125 = vcmp.ge.s32.totalorder %v23, %v75
  %vm126 = vcmp.ge.s32.totalorder %v24, %v76
  %vm127 = vcmp.ge.s32.totalorder %v25, %v76
  %v128 = vsel %vm124, %v22, 0
  %v129 = vsel %vm125, %v23, 0
  %v130 = vsel %vm126, %v24, 0
  %v131 = vsel %vm127, %v25, 0
  %vm132 = vcmp.ge.s32.totalorder %v128, 0
  %vm133 = vcmp.ge.s32.totalorder %v129, 0
  %vm134 = vcmp.ge.s32.totalorder %v130, 0
  %vm135 = vcmp.ge.s32.totalorder %v131, 0
  %v136 = vsel %vm132, 1, 0
  %v137 = vsel %vm133, 1, 0
  %v138 = vsel %vm134, 1, 0
  %v139 = vsel %vm135, 1, 0
  %v140 = vsel %vm34, %v136, 0
  %v141 = vsel %vm34, %v137, 0
  %v142 = vadd.s32 %v140, %v141
  %v143 = vand.u32 %v142, 65535
  %v144 = vshrl.u32 %v142, 16
  %v145 = vcvt.s32.f32 %v143
  %v146 = vcvt.s32.f32 %v144
  %147 = vadd.xlane.f32.xlu0 %v145
  %v148 = vpop.xlane.xlu0 %147
  %149 = vadd.xlane.f32.xlu0 %v146
  %v150 = vpop.xlane.xlu0 %149
  %v151 = vcvt.f32.s32 %v148
  %v152 = vcvt.f32.s32 %v150
  %v153 = vshll.u32 %v152, 16
  %v154 = vadd.s32 %v153, %v151
  %v155 = vsel %vm34, %v138, 0
  %v156 = vsel %vm34, %v139, 0
  %v157 = vadd.s32 %v155, %v156
  %v158 = vand.u32 %v157, 65535
  %v159 = vshrl.u32 %v157, 16
  %v160 = vcvt.s32.f32 %v158
  %v161 = vcvt.s32.f32 %v159
  %162 = vadd.xlane.f32.xlu0 %v160
  %v163 = vpop.xlane.xlu0 %162
  %164 = vadd.xlane.f32.xlu0 %v161
  %v165 = vpop.xlane.xlu0 %164
  %v166 = vcvt.f32.s32 %v163
  %v167 = vcvt.f32.s32 %v165
  %v168 = vshll.u32 %v167, 16
  %v169 = vadd.s32 %v168, %v166
  %v170 = vsel %vm34, %v154, 0
  %v171 = vsel %vm34, %v169, 0
  %v172 = vadd.s32 %v170, %v171
  %vm173 = vcmp.ge.s32.totalorder %v172, 26
  %v174 = vsel %vm173, 0, 2147483648
  loop: start=0, step=1, limit=31
  $region13: #{sparse_conv_forward.1} parent=0 // loop_pre_header
    _
  $region14: #{sparse_conv_forward.1} parent=0 // loop_header
    %s176 = sphi 0, %s180
    %p177 = scmp.ge.s32.totalorder %s176, 31
    %v181 = vphi %v174, %v228
  $region15: #{sparse_conv_forward.1} parent=0 // loop_header_branch
    %179 = sbr.rel (%p177) target = $region19
  $region16: #{sparse_conv_forward.1} parent=0 // loop_body
    %s182 = ssub.s32 30, %s176
    %s183 = sshll.u32 1, %s182
    %v184 = vstv %s183
    %v185 = vadd.s32 %v181, %v184
    %vm186 = vcmp.ge.s32.totalorder %v128, %v185
    %vm187 = vcmp.ge.s32.totalorder %v129, %v185
    %vm188 = vcmp.ge.s32.totalorder %v130, %v185
    %vm189 = vcmp.ge.s32.totalorder %v131, %v185
    %v190 = vsel %vm186, 1, 0
    %v191 = vsel %vm187, 1, 0
    %v192 = vsel %vm188, 1, 0
    %v193 = vsel %vm189, 1, 0
    %v194 = vsel %vm34, %v190, 0
    %v195 = vsel %vm34, %v191, 0
    %v196 = vadd.s32 %v194, %v195
    %v197 = vand.u32 %v196, 65535
    %v198 = vshrl.u32 %v196, 16
    %v199 = vcvt.s32.f32 %v197
    %v200 = vcvt.s32.f32 %v198
    %201 = vadd.xlane.f32.xlu0 %v199
    %v202 = vpop.xlane.xlu0 %201
    %203 = vadd.xlane.f32.xlu0 %v200
    %v204 = vpop.xlane.xlu0 %203
    %v205 = vcvt.f32.s32 %v202
    %v206 = vcvt.f32.s32 %v204
    %v207 = vshll.u32 %v206, 16
    %v208 = vadd.s32 %v207, %v205
    %v209 = vsel %vm34, %v192, 0
    %v210 = vsel %vm34, %v193, 0
    %v211 = vadd.s32 %v209, %v210
    %v212 = vand.u32 %v211, 65535
    %v213 = vshrl.u32 %v211, 16
    %v214 = vcvt.s32.f32 %v212
    %v215 = vcvt.s32.f32 %v213
    %216 = vadd.xlane.f32.xlu0 %v214
    %v217 = vpop.xlane.xlu0 %216
    %218 = vadd.xlane.f32.xlu0 %v215
    %v219 = vpop.xlane.xlu0 %218
    %v220 = vcvt.f32.s32 %v217
    %v221 = vcvt.f32.s32 %v219
    %v222 = vshll.u32 %v221, 16
    %v223 = vadd.s32 %v222, %v220
    %v224 = vsel %vm34, %v208, 0
    %v225 = vsel %vm34, %v223, 0
    %v226 = vadd.s32 %v224, %v225
    %vm227 = vcmp.ge.s32.totalorder %v226, 26
    %v228 = vsel %vm227, %v185, %v181
  $region17: #{sparse_conv_forward.1} parent=0 // loop_footer
    %s180 = sadd.s32 1, %s176
  $region18: #{sparse_conv_forward.1} parent=0 // loop_footer_branch
    %175 = sbr.rel target = $region14
  $region19: #{sparse_conv_forward.1} parent=0 // loop_exit
    _
  %vm229 = vcmp.ge.s32.totalorder %v128, %v181
  %vm230 = vcmp.ge.s32.totalorder %v129, %v181
  %vm231 = vcmp.ge.s32.totalorder %v130, %v181
  %vm232 = vcmp.ge.s32.totalorder %v131, %v181
  %vm233 = vmand %vm124, %vm229
  %vm234 = vmand %vm125, %vm230
  %vm235 = vmand %vm126, %vm231
  %vm236 = vmand %vm127, %vm232
  %v239 = vsel %vm233, %v8, 0.0
  %v240 = vsel %vm234, %v12, 0.0
  %v241 = vsel %vm235, %v9, 0.0
  %v242 = vsel %vm236, %v13, 0.0
  %v247 = vcombine.low %v239, %v240
  %v248 = vcombine.low %v241, %v242
  %251 = vst [vmem:[%s1] sm:$0xff] %v247
  %252 = vst [vmem:[%s1 + $0x8] sm:$0xff] %v248
  // Predicated region
  $region20: #{sparse_conv_forward.1} parent=0 // pred_check
    _
  $region21: #{sparse_conv_forward.1} parent=0 // pred_check_branch
    %254 = sbr.rel (0) target = $region23
  $region22: #{sparse_conv_forward.1} parent=0 // pred_region
    _
  $region23: #{sparse_conv_forward.1} parent=0 // pred_fallthru
    _
  // Predicated region
  $region24: #{sparse_conv_forward.1} parent=0 // pred_check
    _
  $region25: #{sparse_conv_forward.1} parent=0 // pred_check_branch
    %256 = sbr.rel (0) target = $region27
  $region26: #{sparse_conv_forward.1} parent=0 // pred_region
    _
  $region27: #{sparse_conv_forward.1} parent=0 // pred_fallthru
    _

</llo_original>
